<compile_context>
chip_gen: v7x
topology: tpu7x:2x2x1
jax: 0.10.0
libtpu: 0.0.40
codegen_flags: <defaults>
</compile_context>

<pallas_src>
import functools

import jax
import jax.numpy as jnp
from jax.experimental import pallas as pl
from jax.experimental.pallas import tpu as pltpu

_LANE = 128
_HEADROOM = 1.15   # covers small f32 temps (pooled/dense) and layout padding


# ---------------------------------------------------------------------------
# Kernels
# ---------------------------------------------------------------------------
def _se_kernel_vpu(x_ref, w1_ref, b1_ref, w2_ref, b2_ref, o_ref, *, inv_s):
    """Single-pass SE for small C. x:(Bt,C,S) w1:(Ch,C) b1:(1,Ch) w2:(C,Ch) b2:(1,C)."""
    # Global average pool: f32 accumulation over the lane axis, true-S divisor.
    pooled = jnp.sum(x_ref[...], axis=-1, dtype=jnp.float32) * inv_s      # (Bt, C)
    # Linear(C->Ch)+ReLU on the VPU: contraction kept on the lane axis (no .T).
    h = jnp.sum(pooled[:, None, :] * w1_ref[...][None, :, :], axis=-1)    # (Bt, Ch)
    h = jnp.maximum(h + b1_ref[...], 0.0)
    # Linear(Ch->C) + sigmoid (EUP).
    logits = jnp.sum(h[:, None, :] * w2_ref[...][None, :, :], axis=-1)    # (Bt, C)
    scale = jax.nn.sigmoid(logits + b2_ref[...])
    # Re-read x_ref (VMEM re-reads are ~free); multiply in the output dtype.
    o_ref[...] = (x_ref[...] * scale.astype(o_ref.dtype)[:, :, None]).astype(o_ref.dtype)


def _se_kernel_mxu(x_ref, w1t_ref, b1_ref, w2t_ref, b2_ref, o_ref, *, inv_s):
    """Single-pass SE for C >= 128: dense layers on the MXU.
    x:(Bt,C,S) w1t:(C,Ch) b1:(1,Ch) w2t:(Ch,C) b2:(1,C)."""
    pooled = jnp.sum(x_ref[...], axis=-1, dtype=jnp.float32) * inv_s      # (Bt, C)
    h = jnp.dot(pooled, w1t_ref[...], preferred_element_type=jnp.float32)
    h = jnp.maximum(h + b1_ref[...], 0.0)                                 # (Bt, Ch)
    logits = jnp.dot(h, w2t_ref[...], preferred_element_type=jnp.float32) + b2_ref[...]
    scale = jax.nn.sigmoid(logits)                                        # (Bt, C)
    o_ref[...] = (x_ref[...] * scale.astype(o_ref.dtype)[:, :, None]).astype(o_ref.dtype)


def _pool_kernel(x_ref, psum_ref, *, s_total, ts):
    """Two-pass fallback, pass 1: partial pooled sums accumulated over S tiles."""
    s_idx = pl.program_id(1)

    @pl.when(s_idx == 0)
    def _():
        psum_ref[...] = jnp.zeros_like(psum_ref)

    x = x_ref[...]                                                        # (1, C, ts)
    lane = jax.lax.broadcasted_iota(jnp.int32, x.shape, 2) + s_idx * ts
    xm = jnp.where(lane < s_total, x, jnp.zeros_like(x))                  # mask S tail
    psum_ref[...] += jnp.sum(xm, axis=-1, dtype=jnp.float32)[:, :, None]  # (1, C, 1)


def _scale_kernel(x_ref, scale_ref, o_ref):
    """Two-pass fallback, pass 2: broadcast scale multiply, streamed over S tiles."""
    scale = scale_ref[...].astype(o_ref.dtype)                            # (1, C, 1)
    o_ref[...] = (x_ref[...] * scale).astype(o_ref.dtype)


# ---------------------------------------------------------------------------
# Tiling / budget helpers
# ---------------------------------------------------------------------------
def _tpu_vmem_and_budget():
    """Return (vmem_limit_bytes, slab_budget_bytes, two_tensorcores)."""
    vmem_bytes = 64 * 1024 * 1024          # conservative fallback (v7x-sized)
    try:
        vmem_bytes = int(pltpu.get_tpu_info().vmem_capacity_bytes)
    except Exception:
        pass
    if vmem_bytes >= 96 * 1024 * 1024:     # v5e / v6e: 128 MiB VMEM, 1 TC/chip
        return 100 * 1024 * 1024, 88 * 1024 * 1024, False
    # v7x-like: 64 MiB VMEM, 2 TC/chip
    return 32 * 1024 * 1024, 24 * 1024 * 1024, True


def _choose_batch_tile(B, per_row_bytes, slab_budget, extras_bytes, prefer_multi_step):
    """Largest Bt whose double-buffered in+out slabs (+ headroom + weight blocks)
    fit the budget.  Returns 0 if even a single row does not fit (=> two-pass)."""
    usable = max(0, slab_budget - extras_bytes)
    max_bt = int(usable / (4 * per_row_bytes * _HEADROOM))   # 2 bufs x (in + out)
    if max_bt < 1:
        return 0
    bt = min(B, max_bt)
    if prefer_multi_step and B >= 2:
        bt = min(bt, pl.cdiv(B, 2))   # keep >= 2 grid steps for 2-TC chips
    return bt


# ---------------------------------------------------------------------------
# Pallas-call wrappers
# ---------------------------------------------------------------------------
def _se_single_pass(x_flat, w1f, b1_2d, w2f, b2_2d, bt, vmem_limit):
    B, C, S = x_flat.shape
    Ch = w1f.shape[0]
    itemsize = int(x_flat.dtype.itemsize)
    use_mxu = C >= 128

    if use_mxu:
        wa, wb = w1f.T, w2f.T                       # (C, Ch), (Ch, C): dot-ready
        kern = functools.partial(_se_kernel_mxu, inv_s=1.0 / S)
        wa_spec = pl.BlockSpec((C, Ch), lambda b: (0, 0))
        wb_spec = pl.BlockSpec((Ch, C), lambda b: (0, 0))
    else:
        wa, wb = w1f, w2f                           # (Ch, C), (C, Ch): lane contraction
        kern = functools.partial(_se_kernel_vpu, inv_s=1.0 / S)
        wa_spec = pl.BlockSpec((Ch, C), lambda b: (0, 0))
        wb_spec = pl.BlockSpec((C, Ch), lambda b: (0, 0))

    cost = pl.CostEstimate(
        flops=2 * B * C * S + 4 * B * C * Ch,
        transcendentals=B * C,
        bytes_accessed=2 * B * C * S * itemsize + 4 * (2 * C * Ch + C + Ch),
    )

    # NOTE: per-step slabs are sized near the VMEM budget, so default
    # double-buffering already hides DMA; pipeline_mode=pl.Buffered(3) is only
    # worth sweeping when C*S is tiny.
    return pl.pallas_call(
        kern,
        out_shape=jax.ShapeDtypeStruct((B, C, S), x_flat.dtype),
        grid_spec=pltpu.PrefetchScalarGridSpec(
            num_scalar_prefetch=0,
            grid=(pl.cdiv(B, bt),),
            in_specs=[
                pl.BlockSpec((bt, C, S), lambda b: (b, 0, 0)),
                wa_spec,
                pl.BlockSpec((1, Ch), lambda b: (0, 0)),
                wb_spec,
                pl.BlockSpec((1, C), lambda b: (0, 0)),
            ],
            out_specs=pl.BlockSpec((bt, C, S), lambda b: (b, 0, 0)),
        ),
        compiler_params=pltpu.CompilerParams(
            dimension_semantics=("parallel",),
            vmem_limit_bytes=vmem_limit,
        ),
        cost_estimate=cost,
    )(x_flat, wa, b1_2d, wb, b2_2d)


def _se_two_pass(x_flat, w1f, b1_2d, w2f, b2_2d, slab_budget, vmem_limit):
    """S-tiled fallback for rows that exceed the per-step VMEM budget."""
    B, C, S = x_flat.shape
    itemsize = int(x_flat.dtype.itemsize)

    # Largest 128-multiple lane tile whose double-buffered in+out blocks fit.
    max_ts = int(slab_budget / (4 * C * itemsize * _HEADROOM))
    ts = max(_LANE, (max_ts // _LANE) * _LANE)
    ts = min(ts, pl.cdiv(S, _LANE) * _LANE)
    s_steps = pl.cdiv(S, ts)

    # Pass 1: pooled partial sums (f32) accumulated across the S grid axis.
    psum = pl.pallas_call(
        functools.partial(_pool_kernel, s_total=S, ts=ts),
        out_shape=jax.ShapeDtypeStruct((B, C, 1), jnp.float32),
        grid_spec=pltpu.PrefetchScalarGridSpec(
            num_scalar_prefetch=0,
            grid=(B, s_steps),
            in_specs=[pl.BlockSpec((1, C, ts), lambda b, s: (b, 0, s))],
            out_specs=pl.BlockSpec((1, C, 1), lambda b, s: (b, 0, 0)),
        ),
        compiler_params=pltpu.CompilerParams(
            dimension_semantics=("parallel", "arbitrary"),
            vmem_limit_bytes=vmem_limit,
        ),
        cost_estimate=pl.CostEstimate(
            flops=B * C * S, transcendentals=0,
            bytes_accessed=B * C * S * itemsize + B * C * 4),
    )(x_flat)

    # Tiny dense + sigmoid in plain XLA (negligible next to the streaming passes).
    pooled = psum[:, :, 0] * (1.0 / S)                            # (B, C) f32
    h = jnp.maximum(pooled @ w1f.T + b1_2d, 0.0)
    scale = jax.nn.sigmoid(h @ w2f.T + b2_2d)[:, :, None]          # (B, C, 1) f32

    # Pass 2: broadcast scale multiply, streamed over B and S tiles.
    return pl.pallas_call(
        _scale_kernel,
        out_shape=jax.ShapeDtypeStruct((B, C, S), x_flat.dtype),
        grid_spec=pltpu.PrefetchScalarGridSpec(
            num_scalar_prefetch=0,
            grid=(B, s_steps),
            in_specs=[
                pl.BlockSpec((1, C, ts), lambda b, s: (b, 0, s)),
                pl.BlockSpec((1, C, 1), lambda b, s: (b, 0, 0)),
            ],
            out_specs=pl.BlockSpec((1, C, ts), lambda b, s: (b, 0, s)),
        ),
        compiler_params=pltpu.CompilerParams(
            dimension_semantics=("parallel", "parallel"),
            vmem_limit_bytes=vmem_limit,
        ),
        cost_estimate=pl.CostEstimate(
            flops=B * C * S, transcendentals=0,
            bytes_accessed=2 * B * C * S * itemsize + B * C * 4),
    )(x_flat, scale)


def se_block(x, w1, b1, w2, b2, *, slab_budget_bytes=None):
    """x: (B, C, H, W, Z); w1: (Ch, C); b1: (Ch,); w2: (C, Ch); b2: (C,)."""
    B, C, H, W, Z = x.shape
    Ch = w1.shape[0]
    S = H * W * Z
    itemsize = int(x.dtype.itemsize)

    vmem_limit, slab_budget, two_tc = _tpu_vmem_and_budget()
    if slab_budget_bytes is not None:          # test / tuning override
        slab_budget = slab_budget_bytes

    x_flat = x.reshape(B, C, S)                # no padding, no post-slice
    w1f = w1.astype(jnp.float32)
    w2f = w2.astype(jnp.float32)
    b1_2d = b1.reshape(1, Ch).astype(jnp.float32)
    b2_2d = b2.reshape(1, C).astype(jnp.float32)

    per_row_bytes = C * S * itemsize
    extras = 2 * (2 * C * Ch + C + Ch) * 4     # double-buffered f32 weight/bias blocks
    bt = _choose_batch_tile(B, per_row_bytes, slab_budget, extras, prefer_multi_step=two_tc)

    if bt >= 1:
        out_flat = _se_single_pass(x_flat, w1f, b1_2d, w2f, b2_2d, bt, vmem_limit)
    else:
        out_flat = _se_two_pass(x_flat, w1f, b1_2d, w2f, b2_2d, slab_budget, vmem_limit)
    return out_flat.reshape(B, C, H, W, Z)


# ---------------------------------------------------------------------------
# Reference + tests
# ---------------------------------------------------------------------------
def _reference(x, w1, b1, w2, b2):
    pooled = jnp.mean(x, axis=(2, 3, 4))
    h = jnp.maximum(pooled @ w1.T + b1, 0.0)
    logits = h @ w2.T + b2
    scale = jax.nn.sigmoid(logits)[:, :, None, None, None]
    return scale * x


def _make_inputs(key, B, C, Ch, H, W, Z):
    kx, k1, k2, k3, k4 = jax.random.split(key, 5)
    x = jax.random.normal(kx, (B, C, H, W, Z), dtype=jnp.float32)
    w1 = jax.random.normal(k1, (Ch, C), dtype=jnp.float32) * 0.3
    b1 = jax.random.normal(k2, (Ch,), dtype=jnp.float32) * 0.1
    w2 = jax.random.normal(k3, (C, Ch), dtype=jnp.float32) * 0.3
    b2 = jax.random.normal(k4, (C,), dtype=jnp.float32) * 0.1
    return x, w1, b1, w2, b2


if __name__ == "__main__":
    key = jax.random.PRNGKey(0)
    k_a, k_b, k_c = jax.random.split(key, 3)

    # 1) Base case (SEBlock(inchannel=8, divide=4)): tiny C -> VPU dense path.
    x, w1, b1, w2, b2 = _make_inputs(k_a, B=2, C=8, Ch=2, H=4, W=4, Z=4)
    out = jax.block_until_ready(se_block(x, w1, b1, w2, b2))
    ref = _reference(x, w1, b1, w2, b2)
    assert out.shape == x.shape
    assert jnp.allclose(out, ref, atol=1e-5, rtol=1e-5), "mismatch (VPU path)"

    # 2) Realistic channel count -> MXU dense path; non-divisor batch tile
    #    (B=3, Bt forced to 2 via a small slab budget) exercises boundary blocks.
    #    Looser tolerance: f32 MXU matmuls use the default (bf16-pass) precision.
    x, w1, b1, w2, b2 = _make_inputs(k_b, B=3, C=128, Ch=32, H=4, W=4, Z=4)
    out = jax.block_until_ready(se_block(x, w1, b1, w2, b2, slab_budget_bytes=420_000))
    ref = _reference(x, w1, b1, w2, b2)
    assert out.shape == x.shape
    assert jnp.allclose(out, ref, atol=5e-3, rtol=5e-3), "mismatch (MXU path)"

    # 3) Force the S-tiled two-pass fallback (row larger than the tiny budget),
    #    with S=216 (not a multiple of 128) to exercise the lane-tail masking.
    x, w1, b1, w2, b2 = _make_inputs(k_c, B=2, C=8, Ch=2, H=6, W=6, Z=6)
    out = jax.block_until_ready(se_block(x, w1, b1, w2, b2, slab_budget_bytes=16 * 1024))
    ref = _reference(x, w1, b1, w2, b2)
    assert out.shape == x.shape
    assert jnp.allclose(out, ref, atol=1e-5, rtol=1e-5), "mismatch (two-pass path)"

    print("KERNEL_OK")
</pallas_src>

<mosaic_0001>
module attributes {stable_mosaic.version = 11 : i64} {
  func.func @_se_kernel_vpu(%arg0: i32, %arg1: memref<1x8x64xf32, #tpu.memory_space<vmem>>, %arg2: memref<2x8xf32, #tpu.memory_space<vmem>>, %arg3: memref<1x2xf32, #tpu.memory_space<vmem>>, %arg4: memref<8x2xf32, #tpu.memory_space<vmem>>, %arg5: memref<1x8xf32, #tpu.memory_space<vmem>>, %arg6: memref<1x8x64xf32, #tpu.memory_space<vmem>>) attributes {dimension_semantics = [#tpu.dimension_semantics<parallel>], iteration_bounds = array<i64: 2>, scalar_prefetch = 0 : i64, scratch_operands = 0 : i64, tpu.core_type = #tpu.core_type<tc>, window_params = [{transform_indices = @transform_0, window_bounds = array<i64: 1, 8, 64>}, {pipeline_mode = #tpu.pipeline_mode<synchronous>, transform_indices = @transform_1, window_bounds = array<i64: 2, 8>}, {pipeline_mode = #tpu.pipeline_mode<synchronous>, transform_indices = @transform_2, window_bounds = array<i64: 1, 2>}, {pipeline_mode = #tpu.pipeline_mode<synchronous>, transform_indices = @transform_3, window_bounds = array<i64: 8, 2>}, {pipeline_mode = #tpu.pipeline_mode<synchronous>, transform_indices = @transform_4, window_bounds = array<i64: 1, 8>}, {transform_indices = @transform_5, window_bounds = array<i64: 1, 8, 64>}]} {
    %c0 = arith.constant 0 : index
    %c0_0 = arith.constant 0 : index
    %c0_1 = arith.constant 0 : index
    %0 = vector.load %arg1[%c0, %c0_0, %c0_1] : memref<1x8x64xf32, #tpu.memory_space<vmem>>, vector<1x8x64xf32>
    %cst = arith.constant dense<0.000000e+00> : vector<1x8xf32>
    %1 = vector.multi_reduction <add>, %0, %cst [2] : vector<1x8x64xf32> to vector<1x8xf32>
    %cst_2 = arith.constant 1.562500e-02 : f32
    %2 = vector.broadcast %cst_2 : f32 to vector<1x8xf32>
    %3 = arith.mulf %1, %2 : vector<1x8xf32>
    %4 = vector.shape_cast %3 : vector<1x8xf32> to vector<1x1x8xf32>
    %c0_3 = arith.constant 0 : index
    %c0_4 = arith.constant 0 : index
    %5 = vector.load %arg2[%c0_3, %c0_4] : memref<2x8xf32, #tpu.memory_space<vmem>>, vector<2x8xf32>
    %6 = vector.shape_cast %5 : vector<2x8xf32> to vector<1x2x8xf32>
    %7 = vector.broadcast %4 : vector<1x1x8xf32> to vector<1x2x8xf32>
    %8 = arith.mulf %7, %6 : vector<1x2x8xf32>
    %cst_5 = arith.constant dense<0.000000e+00> : vector<1x2xf32>
    %9 = vector.multi_reduction <add>, %8, %cst_5 [2] : vector<1x2x8xf32> to vector<1x2xf32>
    %c0_6 = arith.constant 0 : index
    %c0_7 = arith.constant 0 : index
    %10 = vector.load %arg3[%c0_6, %c0_7] : memref<1x2xf32, #tpu.memory_space<vmem>>, vector<1x2xf32>
    %11 = arith.addf %9, %10 : vector<1x2xf32>
    %cst_8 = arith.constant 0.000000e+00 : f32
    %12 = vector.broadcast %cst_8 : f32 to vector<1x2xf32>
    %13 = arith.maximumf %11, %12 : vector<1x2xf32>
    %14 = vector.shape_cast %13 : vector<1x2xf32> to vector<1x1x2xf32>
    %c0_9 = arith.constant 0 : index
    %c0_10 = arith.constant 0 : index
    %15 = vector.load %arg4[%c0_9, %c0_10] : memref<8x2xf32, #tpu.memory_space<vmem>>, vector<8x2xf32>
    %16 = vector.shape_cast %15 : vector<8x2xf32> to vector<1x8x2xf32>
    %17 = vector.broadcast %14 : vector<1x1x2xf32> to vector<1x8x2xf32>
    %18 = arith.mulf %17, %16 : vector<1x8x2xf32>
    %cst_11 = arith.constant dense<0.000000e+00> : vector<1x8xf32>
    %19 = vector.multi_reduction <add>, %18, %cst_11 [2] : vector<1x8x2xf32> to vector<1x8xf32>
    %c0_12 = arith.constant 0 : index
    %c0_13 = arith.constant 0 : index
    %20 = vector.load %arg5[%c0_12, %c0_13] : memref<1x8xf32, #tpu.memory_space<vmem>>, vector<1x8xf32>
    %21 = arith.addf %19, %20 : vector<1x8xf32>
    %22 = arith.negf %21 : vector<1x8xf32>
    %23 = math.exp %22 : vector<1x8xf32>
    %cst_14 = arith.constant 1.000000e+00 : f32
    %24 = vector.broadcast %cst_14 : f32 to vector<1x8xf32>
    %25 = arith.addf %24, %23 : vector<1x8xf32>
    %26 = arith.divf %24, %25 : vector<1x8xf32>
    %c0_15 = arith.constant 0 : index
    %c0_16 = arith.constant 0 : index
    %c0_17 = arith.constant 0 : index
    %27 = vector.load %arg1[%c0_15, %c0_16, %c0_17] : memref<1x8x64xf32, #tpu.memory_space<vmem>>, vector<1x8x64xf32>
    %28 = vector.shape_cast %26 : vector<1x8xf32> to vector<1x8x1xf32>
    %29 = vector.broadcast %28 : vector<1x8x1xf32> to vector<1x8x64xf32>
    %30 = arith.mulf %27, %29 : vector<1x8x64xf32>
    %c0_18 = arith.constant 0 : index
    %c0_19 = arith.constant 0 : index
    %c0_20 = arith.constant 0 : index
    %31 = vector.load %arg6[%c0_18, %c0_19, %c0_20] : memref<1x8x64xf32, #tpu.memory_space<vmem>>, vector<1x8x64xf32>
    tpu.vector_store %arg6[%c0_18, %c0_19, %c0_20], %30 {strides = array<i32>} : memref<1x8x64xf32, #tpu.memory_space<vmem>>, vector<1x8x64xf32>,
    return
  }
  func.func @transform_0(%arg0: i32) -> (i32, i32, i32) {
    %c0_i32 = arith.constant 0 : i32
    %c0_i32_0 = arith.constant 0 : i32
    %c0_i32_1 = arith.constant 0 : i32
    return %arg0, %c0_i32, %c0_i32_0 : i32, i32, i32
  }
  func.func @transform_1(%arg0: i32) -> (i32, i32) {
    %c0_i32 = arith.constant 0 : i32
    %c0_i32_0 = arith.constant 0 : i32
    %c0_i32_1 = arith.constant 0 : i32
    return %c0_i32, %c0_i32_0 : i32, i32
  }
  func.func @transform_2(%arg0: i32) -> (i32, i32) {
    %c0_i32 = arith.constant 0 : i32
    %c0_i32_0 = arith.constant 0 : i32
    %c0_i32_1 = arith.constant 0 : i32
    return %c0_i32, %c0_i32_0 : i32, i32
  }
  func.func @transform_3(%arg0: i32) -> (i32, i32) {
    %c0_i32 = arith.constant 0 : i32
    %c0_i32_0 = arith.constant 0 : i32
    %c0_i32_1 = arith.constant 0 : i32
    return %c0_i32, %c0_i32_0 : i32, i32
  }
  func.func @transform_4(%arg0: i32) -> (i32, i32) {
    %c0_i32 = arith.constant 0 : i32
    %c0_i32_0 = arith.constant 0 : i32
    %c0_i32_1 = arith.constant 0 : i32
    return %c0_i32, %c0_i32_0 : i32, i32
  }
  func.func @transform_5(%arg0: i32) -> (i32, i32, i32) {
    %c0_i32 = arith.constant 0 : i32
    %c0_i32_0 = arith.constant 0 : i32
    %c0_i32_1 = arith.constant 0 : i32
    return %arg0, %c0_i32, %c0_i32_0 : i32, i32, i32
  }
}

</mosaic_0001>

<llo_original>
// kernel: tpu_custom_call.1
$region0: #{tpu_custom_call.1}
  #allocation0 [shape = 'u32[]', space=smem, size = 0x4, offset = 0x4, fixed_abs, tag = 'smem constant byte address 0x4 - core index']
  #allocation1 [shape = 'u32[144,128]{1,0:T(1,128)}', space=vmem, size = 0x12000, scoped, tag = 'internal scratch']
  %s0 = inlined_call_operand.hbm [shape: f32[2,8,64], index: 0, kind: input, shape index: {}]
  %s1 = inlined_call_operand.vmem [shape: f32[2,8], index: 1, kind: input, shape index: {}]
  %s2 = inlined_call_operand.vmem [shape: f32[1,2], index: 2, kind: input, shape index: {}]
  %s3 = inlined_call_operand.vmem [shape: f32[8,2], index: 3, kind: input, shape index: {}]
  %s4 = inlined_call_operand.vmem [shape: f32[1,8], index: 4, kind: input, shape index: {}]
  %s5 = inlined_call_operand.hbm [shape: f32[2,8,64], index: 5, kind: output, shape index: {}]
  %s6 = sld [smem:[#allocation0]]
  $region57: #{tpu_custom_call.1} parent=0
    _
  %s8 = ssub.s32 1, %s6
  %s9 = scalar_select 0, %s8, %s6
  $region1: #{tpu_custom_call.1} parent=0
    #allocation2 [shape = 'u8[8192]{0}', space=vmem, size = 0x2000, scoped, tag = 'input window, operand 0']
    #allocation3 [shape = 's32[2]{0}', space=sflag, size = 0x8, scoped, tag = 'scoped memory for tpu_custom_call.1']
    #allocation4 [shape = 's32[2]{0}', space=sflag, size = 0x8, scoped, tag = 'scoped memory for tpu_custom_call.1']
    #allocation5 [shape = 'u8[8192]{0}', space=vmem, size = 0x2000, scoped, tag = 'output window, operand 0']
    %10 = vsyncpa [#allocation3], 0
    %s11 = scalar_lea.sflag [#allocation3], 1
    %12 = vsyncpa %s11, 0
    %13 = vsyncpa [#allocation4], 0
    %s14 = scalar_lea.sflag [#allocation4], 1
    %15 = vsyncpa %s14, 0
    loop: start=0, step=1, limit=4
    $region2: #{tpu_custom_call.1} parent=1 // loop_pre_header
      _
    $region3: #{tpu_custom_call.1} parent=1 // loop_header
      %s17 = sphi 0, %s21
      %p18 = scmp.ge.s32.totalorder %s17, 4
      %s27 = sphi 0, %s29
      %s30 = sphi 0, %s27
      %s31 = sphi 0, %s30
      %s47 = sphi 0, %s31
      %s51 = sphi 0, %s51
      %s53 = sphi 0, %s51
      %s54 = sphi 0, %s53
      %s68 = sphi 0, %s54
      %s72 = sphi 0, %s72
      %s74 = sphi 0, %s72
      %s75 = sphi 0, %s74
      %s89 = sphi 0, %s75
      %s93 = sphi 0, %s93
      %s95 = sphi 0, %s93
      %s96 = sphi 0, %s95
      %s110 = sphi 0, %s96
      %s114 = sphi 0, %s114
      %s116 = sphi 0, %s114
      %s117 = sphi 0, %s116
      %s131 = sphi 0, %s117
      %s137 = sphi 0, %s139
      %s140 = sphi 0, %s137
      %s141 = sphi 0, %s140
      %s157 = sphi 0, %s141
    $region4: #{tpu_custom_call.1} parent=1 // loop_header_branch
      %20 = sbr.rel (%p18) target = $region8
    $region5: #{tpu_custom_call.1} parent=1 // loop_body
      %s22 = ssub.s32 %s17, 1
      %s23 = ssub.s32 %s17, 2
      %s24 = sadd.s32 %s17, 1
      %s25 = ssub.s32 %s17, %s24
      %p26 = scmp.eq.s32.totalorder %s25, 0
      %s28 = sadd.s32 %s27, 1
      %s29 = scalar_select %p26, %s27, %s28
      %p32 = pneg %p26
      %p33 = scmp.eq.s32.totalorder %s17, 1
      %p34 = por %p32, %p33
      %p35 = scmp.ne.s32.totalorder %s27, %s30
      %p36 = scmp.eq.s32.totalorder %s17, 0
      %p37 = por %p35, %p36
      %p38 = scmp.ne.s32.totalorder %s27, %s30
      %p39 = scmp.eq.s32.totalorder %s22, 1
      %p40 = por %p38, %p39
      %p41 = scmp.ne.s32.totalorder %s30, %s31
      %p42 = scmp.eq.s32.totalorder %s22, 0
      %p43 = por %p41, %p42
      %p44 = scmp.ne.s32.totalorder %s30, %s31
      %p45 = scmp.eq.s32.totalorder %s23, 1
      %p46 = por %p44, %p45
      %p48 = scmp.ne.s32.totalorder %s31, %s47
      %p49 = scmp.eq.s32.totalorder %s23, 0
      %p50 = por %p48, %p49
      %s52 = sadd.s32 %s51, 1
      %p55 = scmp.eq.s32.totalorder %s17, 1
      %p56 = scmp.ne.s32.totalorder %s51, %s53
      %p57 = scmp.eq.s32.totalorder %s17, 0
      %p58 = por %p56, %p57
      %p59 = scmp.ne.s32.totalorder %s51, %s53
      %p60 = scmp.eq.s32.totalorder %s22, 1
      %p61 = por %p59, %p60
      %p62 = scmp.ne.s32.totalorder %s53, %s54
      %p63 = scmp.eq.s32.totalorder %s22, 0
      %p64 = por %p62, %p63
      %p65 = scmp.ne.s32.totalorder %s53, %s54
      %p66 = scmp.eq.s32.totalorder %s23, 1
      %p67 = por %p65, %p66
      %p69 = scmp.ne.s32.totalorder %s54, %s68
      %p70 = scmp.eq.s32.totalorder %s23, 0
      %p71 = por %p69, %p70
      %s73 = sadd.s32 %s72, 1
      %p76 = scmp.eq.s32.totalorder %s17, 1
      %p77 = scmp.ne.s32.totalorder %s72, %s74
      %p78 = scmp.eq.s32.totalorder %s17, 0
      %p79 = por %p77, %p78
      %p80 = scmp.ne.s32.totalorder %s72, %s74
      %p81 = scmp.eq.s32.totalorder %s22, 1
      %p82 = por %p80, %p81
      %p83 = scmp.ne.s32.totalorder %s74, %s75
      %p84 = scmp.eq.s32.totalorder %s22, 0
      %p85 = por %p83, %p84
      %p86 = scmp.ne.s32.totalorder %s74, %s75
      %p87 = scmp.eq.s32.totalorder %s23, 1
      %p88 = por %p86, %p87
      %p90 = scmp.ne.s32.totalorder %s75, %s89
      %p91 = scmp.eq.s32.totalorder %s23, 0
      %p92 = por %p90, %p91
      %s94 = sadd.s32 %s93, 1
      %p97 = scmp.eq.s32.totalorder %s17, 1
      %p98 = scmp.ne.s32.totalorder %s93, %s95
      %p99 = scmp.eq.s32.totalorder %s17, 0
      %p100 = por %p98, %p99
      %p101 = scmp.ne.s32.totalorder %s93, %s95
      %p102 = scmp.eq.s32.totalorder %s22, 1
      %p103 = por %p101, %p102
      %p104 = scmp.ne.s32.totalorder %s95, %s96
      %p105 = scmp.eq.s32.totalorder %s22, 0
      %p106 = por %p104, %p105
      %p107 = scmp.ne.s32.totalorder %s95, %s96
      %p108 = scmp.eq.s32.totalorder %s23, 1
      %p109 = por %p107, %p108
      %p111 = scmp.ne.s32.totalorder %s96, %s110
      %p112 = scmp.eq.s32.totalorder %s23, 0
      %p113 = por %p111, %p112
      %s115 = sadd.s32 %s114, 1
      %p118 = scmp.eq.s32.totalorder %s17, 1
      %p119 = scmp.ne.s32.totalorder %s114, %s116
      %p120 = scmp.eq.s32.totalorder %s17, 0
      %p121 = por %p119, %p120
      %p122 = scmp.ne.s32.totalorder %s114, %s116
      %p123 = scmp.eq.s32.totalorder %s22, 1
      %p124 = por %p122, %p123
      %p125 = scmp.ne.s32.totalorder %s116, %s117
      %p126 = scmp.eq.s32.totalorder %s22, 0
      %p127 = por %p125, %p126
      %p128 = scmp.ne.s32.totalorder %s116, %s117
      %p129 = scmp.eq.s32.totalorder %s23, 1
      %p130 = por %p128, %p129
      %p132 = scmp.ne.s32.totalorder %s117, %s131
      %p133 = scmp.eq.s32.totalorder %s23, 0
      %p134 = por %p132, %p133
      %s135 = ssub.s32 %s17, %s24
      %p136 = scmp.eq.s32.totalorder %s135, 0
      %s138 = sadd.s32 %s137, 1
      %s139 = scalar_select %p136, %s137, %s138
      %p142 = pneg %p136
      %p143 = scmp.eq.s32.totalorder %s17, 1
      %p144 = por %p142, %p143
      %p145 = scmp.ne.s32.totalorder %s137, %s140
      %p146 = scmp.eq.s32.totalorder %s17, 0
      %p147 = por %p145, %p146
      %p148 = scmp.ne.s32.totalorder %s137, %s140
      %p149 = scmp.eq.s32.totalorder %s22, 1
      %p150 = por %p148, %p149
      %p151 = scmp.ne.s32.totalorder %s140, %s141
      %p152 = scmp.eq.s32.totalorder %s22, 0
      %p153 = por %p151, %p152
      %p154 = scmp.ne.s32.totalorder %s140, %s141
      %p155 = scmp.eq.s32.totalorder %s23, 1
      %p156 = por %p154, %p155
      %p158 = scmp.ne.s32.totalorder %s141, %s157
      %p159 = scmp.eq.s32.totalorder %s23, 0
      %p160 = por %p158, %p159
      %p161 = scmp.le.s32.totalorder 1, %s17
      %p162 = scmp.lt.s32.totalorder %s17, 3
      %p163 = pnand %p161, %p162
      %p164 = pneg %p163
      // Predicated region
      $region9: #{tpu_custom_call.1} parent=5 // pred_check
        _
      $region10: #{tpu_custom_call.1} parent=5 // pred_check_branch
        %166 = sbr.rel (%p163) target = $region12
      $region11: #{tpu_custom_call.1} parent=5 // pred_region
        %s167 = ssub.s32 %s17, 1
        // Predicated region
        $region13: #{tpu_custom_call.1} parent=11 // pred_check
          %p168 = pneg %p64
        $region14: #{tpu_custom_call.1} parent=11 // pred_check_branch
          %170 = sbr.rel (%p168) target = $region16
        $region15: #{tpu_custom_call.1} parent=11 // pred_region
          _
        $region16: #{tpu_custom_call.1} parent=11 // pred_fallthru
          _
        // Predicated region
        $region17: #{tpu_custom_call.1} parent=11 // pred_check
          %p171 = pneg %p85
        $region18: #{tpu_custom_call.1} parent=11 // pred_check_branch
          %173 = sbr.rel (%p171) target = $region20
        $region19: #{tpu_custom_call.1} parent=11 // pred_region
          _
        $region20: #{tpu_custom_call.1} parent=11 // pred_fallthru
          _
        // Predicated region
        $region21: #{tpu_custom_call.1} parent=11 // pred_check
          %p174 = pneg %p106
        $region22: #{tpu_custom_call.1} parent=11 // pred_check_branch
          %176 = sbr.rel (%p174) target = $region24
        $region23: #{tpu_custom_call.1} parent=11 // pred_region
          _
        $region24: #{tpu_custom_call.1} parent=11 // pred_fallthru
          _
        // Predicated region
        $region25: #{tpu_custom_call.1} parent=11 // pred_check
          %p177 = pneg %p127
        $region26: #{tpu_custom_call.1} parent=11 // pred_check_branch
          %179 = sbr.rel (%p177) target = $region28
        $region27: #{tpu_custom_call.1} parent=11 // pred_region
          _
        $region28: #{tpu_custom_call.1} parent=11 // pred_fallthru
          _
      $region12: #{tpu_custom_call.1} parent=5 // pred_fallthru
        _
      %p180 = scmp.lt.s32.totalorder %s17, 2
      // Predicated region
      $region29: #{tpu_custom_call.1} parent=5 // pred_check
        %p181 = pneg %p180
      $region30: #{tpu_custom_call.1} parent=5 // pred_check_branch
        %183 = sbr.rel (%p181) target = $region32
      $region31: #{tpu_custom_call.1} parent=5 // pred_region
        // Predicated region
        $region33: #{tpu_custom_call.1} parent=31 // pred_check
          %p184 = pneg %p37
        $region34: #{tpu_custom_call.1} parent=31 // pred_check_branch
          %186 = sbr.rel (%p184) target = $region36
        $region35: #{tpu_custom_call.1} parent=31 // pred_region
          %s187 = sand.u32 %s27, 1
          %s188 = scalar_lea.sflag [#allocation3], %s187
          %s189 = sand.u32 %s27, 1
          %s190 = smul.addr %s189, 8
          %s191 = scalar_lea.vmem [#allocation2], %s190
          %s193 = ssub.s32 128, 128
          %194 = vsyncadd %s188, %s193
          %s195 = smul.addr %s17, 128
          %s196 = scalar_lea.hbm %s0, %s195
          %s198 = sshll.u32 %s191, 4
          %s199 = int_to_ptr.vmem [resolvable:$true] %s198
          %201 = dma.hbm_to_vmem [thread:$0]  %s196, 128, %s199, %s188
        $region36: #{tpu_custom_call.1} parent=31 // pred_fallthru
          _
      $region32: #{tpu_custom_call.1} parent=5 // pred_fallthru
        _
      %p202 = scmp.le.s32.totalorder 1, %s17
      %p203 = scmp.lt.s32.totalorder %s17, 3
      %p204 = pnand %p202, %p203
      %p205 = pneg %p204
      // Predicated region
      $region37: #{tpu_custom_call.1} parent=5 // pred_check
        _
      $region38: #{tpu_custom_call.1} parent=5 // pred_check_branch
        %207 = sbr.rel (%p204) target = $region40
      $region39: #{tpu_custom_call.1} parent=5 // pred_region
        %s208 = ssub.s32 %s17, 1
        %s209 = sand.u32 %s30, 1
        %s210 = scalar_lea.sflag [#allocation3], %s209
        %s211 = sand.u32 %s30, 1
        %s212 = smul.addr %s211, 8
        %s213 = scalar_lea.vmem [#allocation2], %s212
        // Predicated region
        $region41: #{tpu_custom_call.1} parent=39 // pred_check
          %p214 = pneg %p43
        $region42: #{tpu_custom_call.1} parent=39 // pred_check_branch
          %216 = sbr.rel (%p214) target = $region44
        $region43: #{tpu_custom_call.1} parent=39 // pred_region
          %217 = dma.done %s210, 128
        $region44: #{tpu_custom_call.1} parent=39 // pred_fallthru
          _
        %s218 = sand.u32 %s30, 1
        %s219 = scalar_lea.sflag [#allocation3], %s218
        %s220 = sand.u32 %s30, 1
        %s221 = smul.addr %s220, 8
        %s222 = scalar_lea.vmem [#allocation2], %s221
        %p223 = pneg %p43
        %p224 = pneg %p40
        %p225 = pneg %p64
        %p226 = pneg %p61
        %p227 = pneg %p85
        %p228 = pneg %p82
        %p229 = pneg %p106
        %p230 = pneg %p103
        %p231 = pneg %p127
        %p232 = pneg %p124
        %p233 = pneg %p153
        %p234 = pneg %p150
        %s235 = sand.u32 %s140, 1
        %s236 = scalar_lea.sflag [#allocation4], %s235
        %s237 = sand.u32 %s140, 1
        %s238 = smul.addr %s237, 8
        %s239 = scalar_lea.vmem [#allocation5], %s238
        %v240 = vld [vmem:[%s213] sm:$0xff]
        %vm241 = vcmask 523264
        %v242 = vsel %vm241, %v240, 0.0
        %243 = vadd.xlane.f32.xlu0 %v242
        %v244 = vpop.xlane.xlu0 %243
        %v245 = vmul.f32 %v244, 0.015625
        %v246 = vld [vmem:[%s1] sm:$0x3]
        %v248 = vlaneseq
        %v249 = vshrl.u32 %v248, 7
        %v250 = vsub.s32 0, %v249
        %v251 = vrot.slane %v246, %v250
        %253 = vbcast.lane.b32.xlu0 %v251, 256
        %v254 = vpop.permute.xlu0 %253
        %v255 = vlaneseq
        %v256 = vshrl.u32 %v255, 7
        %v257 = vsub.s32 1, %v256
        %v258 = vrot.slane %v246, %v257
        %260 = vbcast.lane.b32.xlu0 %v258, 256
        %v261 = vpop.permute.xlu0 %260
        %v264 = vmul.f32 %v245, %v254
        %v265 = vmul.f32 %v245, %v261
        %268 = vset.pattern.permute.xlu0 0
        %269 = vperm.xlu0 %268, %v264
        %v270 = vpop.permute.xlu0 %269
        %271 = vset.pattern.permute.xlu0 0
        %272 = vperm.xlu0 %271, %v265
        %v273 = vpop.permute.xlu0 %272
        %v274 = vlaneseq
        %v275 = vand.u32 %v274, 127
        %v276 = vlaneseq
        %v277 = vshrl.u32 %v276, 7
        %v278 = vsub.s32 %v275, %v277
        %v279 = vrot.slane %v270, %v278
        %v280 = vlaneseq
        %v281 = vshrl.u32 %v280, 7
        %v282 = vsub.s32 %v275, %v281
        %v283 = vrot.slane %v273, %v282
        %vm284 = vcmask 1041409
        %v285 = vsel %vm284, %v283, %v279
        %vm287 = vcmask 58368
        %v288 = vsel %vm287, %v285, 0.0
        %289 = vadd.xlane.f32.xlu0 %v288
        %v290 = vpop.xlane.xlu0 %289
        %v291 = vld [vmem:[%s2] sm:$0x1]
        %v293 = vlaneseq
        %v294 = vshrl.u32 %v293, 7
        %v295 = vsub.s32 0, %v294
        %v296 = vrot.slane %v291, %v295
        %298 = vbcast.lane.b32.xlu0 %v296, 256
        %v299 = vpop.permute.xlu0 %298
        %v301 = vadd.f32 %v290, %v299
        %v302 = vmax.f32 %v301, 0.0
        %v303 = vld [vmem:[%s3] sm:$0xff]
        %v305 = vlaneseq
        %v306 = vshrl.u32 %v305, 7
        %v307 = vsub.s32 0, %v306
        %v308 = vrot.slane %v303, %v307
        %310 = vbcast.lane.b32.xlu0 %v308, 256
        %v311 = vpop.permute.xlu0 %310
        %v312 = vlaneseq
        %v313 = vshrl.u32 %v312, 7
        %v314 = vsub.s32 1, %v313
        %v315 = vrot.slane %v303, %v314
        %317 = vbcast.lane.b32.xlu0 %v315, 256
        %v318 = vpop.permute.xlu0 %317
        %v319 = vlaneseq
        %v320 = vshrl.u32 %v319, 7
        %v321 = vsub.s32 2, %v320
        %v322 = vrot.slane %v303, %v321
        %324 = vbcast.lane.b32.xlu0 %v322, 256
        %v325 = vpop.permute.xlu0 %324
        %v326 = vlaneseq
        %v327 = vshrl.u32 %v326, 7
        %v328 = vsub.s32 3, %v327
        %v329 = vrot.slane %v303, %v328
        %331 = vbcast.lane.b32.xlu0 %v329, 256
        %v332 = vpop.permute.xlu0 %331
        %v333 = vlaneseq
        %v334 = vshrl.u32 %v333, 7
        %v335 = vsub.s32 4, %v334
        %v336 = vrot.slane %v303, %v335
        %338 = vbcast.lane.b32.xlu0 %v336, 256
        %v339 = vpop.permute.xlu0 %338
        %v340 = vlaneseq
        %v341 = vshrl.u32 %v340, 7
        %v342 = vsub.s32 5, %v341
        %v343 = vrot.slane %v303, %v342
        %345 = vbcast.lane.b32.xlu0 %v343, 256
        %v346 = vpop.permute.xlu0 %345
        %v347 = vlaneseq
        %v348 = vshrl.u32 %v347, 7
        %v349 = vsub.s32 6, %v348
        %v350 = vrot.slane %v303, %v349
        %352 = vbcast.lane.b32.xlu0 %v350, 256
        %v353 = vpop.permute.xlu0 %352
        %v354 = vlaneseq
        %v355 = vshrl.u32 %v354, 7
        %v356 = vsub.s32 7, %v355
        %v357 = vrot.slane %v303, %v356
        %359 = vbcast.lane.b32.xlu0 %v357, 256
        %v360 = vpop.permute.xlu0 %359
        %v369 = vmul.f32 %v302, %v311
        %v370 = vmul.f32 %v302, %v318
        %v371 = vmul.f32 %v302, %v325
        %v372 = vmul.f32 %v302, %v332
        %v373 = vmul.f32 %v302, %v339
        %v374 = vmul.f32 %v302, %v346
        %v375 = vmul.f32 %v302, %v353
        %v376 = vmul.f32 %v302, %v360
        %385 = vset.pattern.permute.xlu0 0
        %386 = vperm.xlu0 %385, %v369
        %v387 = vpop.permute.xlu0 %386
        %388 = vset.pattern.permute.xlu0 0
        %389 = vperm.xlu0 %388, %v370
        %v390 = vpop.permute.xlu0 %389
        %391 = vset.pattern.permute.xlu0 0
        %392 = vperm.xlu0 %391, %v371
        %v393 = vpop.permute.xlu0 %392
        %394 = vset.pattern.permute.xlu0 0
        %395 = vperm.xlu0 %394, %v372
        %v396 = vpop.permute.xlu0 %395
        %397 = vset.pattern.permute.xlu0 0
        %398 = vperm.xlu0 %397, %v373
        %v399 = vpop.permute.xlu0 %398
        %400 = vset.pattern.permute.xlu0 0
        %401 = vperm.xlu0 %400, %v374
        %v402 = vpop.permute.xlu0 %401
        %403 = vset.pattern.permute.xlu0 0
        %404 = vperm.xlu0 %403, %v375
        %v405 = vpop.permute.xlu0 %404
        %406 = vset.pattern.permute.xlu0 0
        %407 = vperm.xlu0 %406, %v376
        %v408 = vpop.permute.xlu0 %407
        %v409 = vlaneseq
        %v410 = vshrl.u32 %v409, 7
        %v411 = vsub.s32 %v275, %v410
        %v412 = vrot.slane %v387, %v411
        %v413 = vlaneseq
        %v414 = vshrl.u32 %v413, 7
        %v415 = vsub.s32 %v275, %v414
        %v416 = vrot.slane %v390, %v415
        %v417 = vlaneseq
        %v418 = vshrl.u32 %v417, 7
        %v419 = vsub.s32 %v275, %v418
        %v420 = vrot.slane %v393, %v419
        %v421 = vlaneseq
        %v422 = vshrl.u32 %v421, 7
        %v423 = vsub.s32 %v275, %v422
        %v424 = vrot.slane %v396, %v423
        %v425 = vlaneseq
        %v426 = vshrl.u32 %v425, 7
        %v427 = vsub.s32 %v275, %v426
        %v428 = vrot.slane %v399, %v427
        %v429 = vlaneseq
        %v430 = vshrl.u32 %v429, 7
        %v431 = vsub.s32 %v275, %v430
        %v432 = vrot.slane %v402, %v431
        %v433 = vlaneseq
        %v434 = vshrl.u32 %v433, 7
        %v435 = vsub.s32 %v275, %v434
        %v436 = vrot.slane %v405, %v435
        %v437 = vlaneseq
        %v438 = vshrl.u32 %v437, 7
        %v439 = vsub.s32 %v275, %v438
        %v440 = vrot.slane %v408, %v439
        %v441 = vsel %vm284, %v416, %v412
        %vm442 = vcmask 1042434
        %v443 = vsel %vm442, %v420, %v441
        %vm444 = vcmask 1043459
        %v445 = vsel %vm444, %v424, %v443
        %vm446 = vcmask 1044484
        %v447 = vsel %vm446, %v428, %v445
        %vm448 = vcmask 1045509
        %v449 = vsel %vm448, %v432, %v447
        %vm450 = vcmask 1046534
        %v451 = vsel %vm450, %v436, %v449
        %vm452 = vcmask 1047559
        %v453 = vsel %vm452, %v440, %v451
        %vm455 = vcmask 15360
        %v456 = vsel %vm455, %v453, 0.0
        %457 = vadd.xlane.f32.xlu0 %v456
        %v458 = vpop.xlane.xlu0 %457
        %v459 = vld [vmem:[%s4] sm:$0x1]
        %v461 = vlaneseq
        %v462 = vshrl.u32 %v461, 7
        %v463 = vsub.s32 0, %v462
        %v464 = vrot.slane %v459, %v463
        %466 = vbcast.lane.b32.xlu0 %v464, 256
        %v467 = vpop.permute.xlu0 %466
        %v469 = vadd.f32 %v458, %v467
        %v470 = vxor.u32 %v469, 2147483648
        %v471 = vmul.f32 %v470, 1.442695
        %v472 = vpow.pop %v471
        %v473 = vadd.f32 %v472, 1.0
        %v474 = vrcp.pop %v473
        %v475 = vmul.f32 1.0, %v474
        %477 = vset.pattern.permute.xlu0 0
        %478 = vperm.xlu0 %477, %v475
        %v479 = vpop.permute.xlu0 %478
        %v481 = vmul.f32 %v240, %v479
        %482 = vst.msk [vmem:[%s239] sm:$0xff] %vm241, %v481
        %s483 = sand.u32 %s140, 1
        %s484 = scalar_lea.sflag [#allocation4], %s483
        %s485 = sand.u32 %s140, 1
        %s486 = smul.addr %s485, 8
        %s487 = scalar_lea.vmem [#allocation5], %s486
        // Predicated region
        $region45: #{tpu_custom_call.1} parent=39 // pred_check
          %p488 = pneg %p150
        $region46: #{tpu_custom_call.1} parent=39 // pred_check_branch
          %490 = sbr.rel (%p488) target = $region48
        $region47: #{tpu_custom_call.1} parent=39 // pred_region
          %s492 = ssub.s32 128, 128
          %493 = vsyncadd %s484, %s492
          %s494 = smul.addr %s22, 128
          %s495 = scalar_lea.hbm %s5, %s494
          %s497 = sshll.u32 %s487, 4
          %s498 = int_to_ptr.vmem [resolvable:$true] %s497
          %500 = dma.vmem_to_hbm [thread:$0]  %s498, 128, %s495, %s484
        $region48: #{tpu_custom_call.1} parent=39 // pred_fallthru
          _
      $region40: #{tpu_custom_call.1} parent=5 // pred_fallthru
        _
      %p501 = scmp.le.s32.totalorder 2, %s17
      // Predicated region
      $region49: #{tpu_custom_call.1} parent=5 // pred_check
        %p502 = pneg %p501
      $region50: #{tpu_custom_call.1} parent=5 // pred_check_branch
        %504 = sbr.rel (%p502) target = $region52
      $region51: #{tpu_custom_call.1} parent=5 // pred_region
        %s505 = ssub.s32 %s17, 2
        // Predicated region
        $region53: #{tpu_custom_call.1} parent=51 // pred_check
          %p506 = pneg %p156
        $region54: #{tpu_custom_call.1} parent=51 // pred_check_branch
          %508 = sbr.rel (%p506) target = $region56
        $region55: #{tpu_custom_call.1} parent=51 // pred_region
          %s509 = sand.u32 %s141, 1
          %s510 = scalar_lea.sflag [#allocation4], %s509
          %s511 = sand.u32 %s141, 1
          %s512 = smul.addr %s511, 8
          %s513 = scalar_lea.vmem [#allocation5], %s512
          %514 = dma.done %s510, 128
        $region56: #{tpu_custom_call.1} parent=51 // pred_fallthru
          _
      $region52: #{tpu_custom_call.1} parent=5 // pred_fallthru
        _
    $region6: #{tpu_custom_call.1} parent=1 // loop_footer
      %s21 = sadd.s32 1, %s17
    $region7: #{tpu_custom_call.1} parent=1 // loop_footer_branch
      %16 = sbr.rel target = $region3
    $region8: #{tpu_custom_call.1} parent=1 // loop_exit
      _
    %515 = vsyncpa [#allocation3], 1
    %s516 = scalar_lea.sflag [#allocation3], 1
    %517 = vsyncpa %s516, 1
    %518 = vsyncpa [#allocation4], 1
    %s519 = scalar_lea.sflag [#allocation4], 1
    %520 = vsyncpa %s519, 1

</llo_original>
